<compile_context>
chip_gen: v7x
topology: tpu7x:2x2x1
jax: 0.10.0
libtpu: 0.0.40
codegen_flags: <defaults>
</compile_context>

<pallas_src>
import functools

import jax
import jax.numpy as jnp
from jax.experimental import pallas as pl
from jax.experimental.pallas import tpu as pltpu


# ----------------------------------------------------------------------------
# Chunk planning helpers (all static / trace-time Python)
# ----------------------------------------------------------------------------
_NBUF = 4                              # DMAs in flight
_DEFAULT_CHUNK_BYTES = 2 * 1024 * 1024 # ~2 MiB per DMA chunk
_MAX_CHUNKS = 128                      # bound for the unrolled issue loop


def _cdiv(a: int, b: int) -> int:
    return -(-a // b)


def _sublane_granule(dtype) -> int:
    # f32 -> 8, bf16/f16 -> 16, int8/fp8 -> 32 (sub-32-bit packs along sublanes).
    return max(8, 32 // jnp.dtype(dtype).itemsize)


def _chunk_plan(rows: int, width: int, itemsize: int, granule: int,
                chunk_bytes: int):
    """Static list of (start_row, num_rows) chunks covering [0, rows)."""
    row_bytes = max(1, width * itemsize)
    chunk_rows = max(granule, (max(1, chunk_bytes // row_bytes) // granule) * granule)
    # Keep the unrolled DMA-issue loop bounded.
    if _cdiv(rows, chunk_rows) > _MAX_CHUNKS:
        chunk_rows = _cdiv(_cdiv(rows, _MAX_CHUNKS), granule) * granule
    chunk_rows = min(chunk_rows, rows)
    starts = list(range(0, rows, chunk_rows))
    sizes = [min(chunk_rows, rows - s) for s in starts]
    return starts, sizes


# ----------------------------------------------------------------------------
# Kernel: chunked HBM -> HBM DMA copy with up to _NBUF DMAs in flight
# ----------------------------------------------------------------------------
def _make_dma_copy_kernel(starts, sizes, nbuf):
    n = len(starts)

    def kernel(x_hbm, o_hbm, sem):
        if n == 1:
            # Whole-array DMA: no slicing, no VMEM, one descriptor.
            cp = pltpu.make_async_copy(x_hbm, o_hbm, sem.at[0])
            cp.start()
            cp.wait()
            return

        def mk(i):
            s, z = starts[i], sizes[i]
            return pltpu.make_async_copy(
                x_hbm.at[pl.ds(s, z), :],
                o_hbm.at[pl.ds(s, z), :],
                sem.at[i % nbuf],
            )

        # Prime up to nbuf DMAs, then wait i / issue i+nbuf to keep the HBM
        # read and write streams saturated.
        for i in range(min(nbuf, n)):
            mk(i).start()
        for i in range(n):
            mk(i).wait()
            if i + nbuf < n:
                mk(i + nbuf).start()

    return kernel


def _hbm_copy_2d(x2d: jax.Array, chunk_bytes: int = _DEFAULT_CHUNK_BYTES) -> jax.Array:
    """Identity copy of a 2-D slab via direct HBM->HBM DMA (no VMEM traffic)."""
    rows, width = x2d.shape
    itemsize = x2d.dtype.itemsize
    granule = _sublane_granule(x2d.dtype)
    starts, sizes = _chunk_plan(rows, width, itemsize, granule, chunk_bytes)
    kernel = _make_dma_copy_kernel(starts, sizes, _NBUF)

    return pl.pallas_call(
        kernel,
        out_shape=jax.ShapeDtypeStruct((rows, width), x2d.dtype),
        in_specs=[pl.BlockSpec(memory_space=pl.ANY)],
        out_specs=pl.BlockSpec(memory_space=pl.ANY),
        scratch_shapes=[pltpu.SemaphoreType.DMA((_NBUF,))],
        cost_estimate=pl.CostEstimate(
            flops=0,
            transcendentals=0,
            bytes_accessed=2 * rows * width * itemsize,
        ),
    )(x2d)


# ----------------------------------------------------------------------------
# Forward wrapper
# ----------------------------------------------------------------------------
def encoder_forward(x: jax.Array, *, use_pallas: bool = True,
                    chunk_bytes: int = _DEFAULT_CHUNK_BYTES) -> jax.Array:
    """Pass-through standing in for the abstract Encoder.forward.

    use_pallas=False returns the input directly (zero HBM traffic) — the
    preferred production path for an identity module.  use_pallas=True runs
    the chunked HBM->HBM DMA copy kernel.
    """
    if not use_pallas:
        return x

    orig_shape = x.shape
    total = int(x.size)
    if total == 0:
        return x

    # Present a lane-dense (rows, 128*k) slab when possible (nice contiguous
    # DMA strides); otherwise fall back to the natural 2-D view.  All paths go
    # through HBM->HBM DMA, so none of them risk VMEM OOM.
    width = None
    for w in (1024, 512, 256, 128):
        if total % w == 0:
            width = w
            break

    if width is not None:
        x2d = x.reshape(total // width, width)          # metadata-only reshape
    elif x.ndim >= 2:
        x2d = x.reshape(-1, orig_shape[-1])
    else:
        x2d = x.reshape(1, total)

    out2d = _hbm_copy_2d(x2d, chunk_bytes)
    return out2d.reshape(orig_shape)


# ----------------------------------------------------------------------------
# Module mirror
# ----------------------------------------------------------------------------
class Encoder:
    """JAX/Pallas mirror of the abstract PyTorch Encoder base class."""

    def __init__(self):
        # Reference __init__ declares no parameters.
        pass

    @classmethod
    def from_config(cls, config):
        # TODO(synk): abstract in the reference module (raises NotImplementedError).
        raise NotImplementedError

    def forward(self, doc):
        # TODO(synk): abstract in the reference module (raises NotImplementedError);
        # concrete subclasses define the real encoder.  We expose the optimized
        # HBM->HBM DMA pass-through on precomputed activations instead.
        return encoder_forward(doc)

    def __call__(self, doc):
        return self.forward(doc)

    def get_embed_dim(self):
        # TODO(synk): abstract in the reference module (raises NotImplementedError).
        raise NotImplementedError

    def get_span_embedding(self, encoder_output, span):
        # TODO(synk): abstract in the reference module (raises NotImplementedError).
        raise NotImplementedError


# ----------------------------------------------------------------------------
# Demo / smoke test
# ----------------------------------------------------------------------------
if __name__ == "__main__":
    key = jax.random.PRNGKey(0)

    # 1) Small "document" activations (seq, hidden) — single whole-array DMA.
    seq, hidden = 8, 32
    x = jax.random.normal(key, (seq, hidden), dtype=jnp.float32)
    enc = Encoder()
    out = jax.block_until_ready(enc.forward(x))
    assert out.shape == (seq, hidden)
    assert out.dtype == x.dtype
    assert jnp.allclose(out, x)

    # 2) bf16 input with a tiny chunk_bytes to exercise the multi-DMA-in-flight
    #    pipeline (8 chunks > _NBUF=4) at a small total size.
    k2 = jax.random.PRNGKey(1)
    xb = jax.random.normal(k2, (8, 128, 128), dtype=jnp.float32).astype(jnp.bfloat16)
    outb = jax.block_until_ready(encoder_forward(xb, chunk_bytes=32 * 1024))
    assert outb.shape == xb.shape and outb.dtype == xb.dtype
    assert jnp.array_equal(outb, xb)

    # 3) Non-lane-dense shape (last dim not a multiple of 128) — fallback path.
    k3 = jax.random.PRNGKey(2)
    xn = jax.random.normal(k3, (8, 33), dtype=jnp.float32)
    outn = jax.block_until_ready(encoder_forward(xn))
    assert jnp.allclose(outn, xn)

    # 4) Zero-copy escape hatch.
    out0 = jax.block_until_ready(encoder_forward(x, use_pallas=False))
    assert jnp.allclose(out0, x)

    print("KERNEL_OK")
</pallas_src>

<mosaic_0001>
module attributes {stable_mosaic.version = 11 : i64} {
  func.func @kernel(%arg0: memref<1x256xf32, #tpu.memory_space<any>>, %arg1: memref<1x256xf32, #tpu.memory_space<any>>, %arg2: memref<4x!tpu.dma_semaphore, #tpu.memory_space<semaphore_mem>>) attributes {dimension_semantics = [], scalar_prefetch = 0 : i64, scratch_operands = 1 : i64, tpu.core_type = #tpu.core_type<tc>} {
    %c0_i32 = arith.constant 0 : i32
    %0 = tpu.memref_slice %arg2[%c0_i32] : memref<4x!tpu.dma_semaphore, #tpu.memory_space<semaphore_mem>> -> memref<1x!tpu.dma_semaphore, #tpu.memory_space<semaphore_mem>>
    %1 = tpu.memref_squeeze %0 : memref<1x!tpu.dma_semaphore, #tpu.memory_space<semaphore_mem>> -> memref<!tpu.dma_semaphore, #tpu.memory_space<semaphore_mem>>
    tpu.enqueue_dma source(%arg0 : memref<1x256xf32, #tpu.memory_space<any>>) target(%arg1 : memref<1x256xf32, #tpu.memory_space<any>>) target_semaphore(%1 : memref<!tpu.dma_semaphore, #tpu.memory_space<semaphore_mem>>)
    %c0_i32_0 = arith.constant 0 : i32
    %2 = tpu.memref_slice %arg2[%c0_i32_0] : memref<4x!tpu.dma_semaphore, #tpu.memory_space<semaphore_mem>> -> memref<1x!tpu.dma_semaphore, #tpu.memory_space<semaphore_mem>>
    %3 = tpu.memref_squeeze %2 : memref<1x!tpu.dma_semaphore, #tpu.memory_space<semaphore_mem>> -> memref<!tpu.dma_semaphore, #tpu.memory_space<semaphore_mem>>
    tpu.wait_dma2 semaphore(%3 : memref<!tpu.dma_semaphore, #tpu.memory_space<semaphore_mem>>) src(%arg0 : memref<1x256xf32, #tpu.memory_space<any>>) dst(%arg1 : memref<1x256xf32, #tpu.memory_space<any>>)
    return
  }
}

</mosaic_0001>

<llo_original>
// kernel: tpu_custom_call.1
$region0: #{tpu_custom_call.1}
  #allocation0 [shape = 'u32[]', space=smem, size = 0x4, offset = 0x4, fixed_abs, tag = 'smem constant byte address 0x4 - core index']
  #allocation1 [shape = 'u32[144,128]{1,0:T(1,128)}', space=vmem, size = 0x12000, scoped, tag = 'internal scratch']
  #allocation2 [shape = 's32[4]{0}', space=sflag, size = 0x10, scoped, tag = 'scratch operand']
  #allocation3 [shape = 's32[]', space=sflag, size = 0x4, offset = 0, fixed_abs, tag = 'sflag constant byte address 0x0 - dummy sync flag']
  #allocation4 [shape = 'u32[0]{0}', space=smem, size = 0, offset = 0, fixed_abs, tag = 'smem constant byte address 0x0 - null']
  %s0 = inlined_call_operand.hbm [shape: f32[1,256], index: 0, kind: input, shape index: {}]
  %s1 = inlined_call_operand.hbm [shape: f32[1,256], index: 1, kind: output, shape index: {}]
  %s2 = sld [smem:[#allocation0]]
  $region2: #{tpu_custom_call.1} parent=0
    _
  %s4 = ssub.s32 1, %s2
  %s5 = scalar_select 0, %s4, %s2
  %s7 = sshll.u32 1, 14
  %s8 = sxor.u32 4294967295, %s7
  %s11 = sshll.u32 3, 24
  %s12 = sxor.u32 4294967295, %s11
  %s13 = sand.u32 0, %s12
  %s15 = sor.u32 %s13, 0
  %18 = dma.general %s0, 32, %s1, [#allocation2], [#allocation3], [#allocation4], %s15, 0
  %s19 = smul.u32 1, 2
  %s20 = sshll.u32 %s19, 4
  %21 = dma.done [#allocation2], %s20
  %22 = vsyncmov [#allocation2]
  %s23 = vpop.sfrf %22
  %p24 = scmp.eq.s32.totalorder %s23, 0
  %p25 = pneg %p24
  %27 = shalt.err (%p25)
  %s28 = scalar_lea.sflag [#allocation2], 1
  %29 = vsyncmov %s28
  %s30 = vpop.sfrf %29
  %p31 = scmp.eq.s32.totalorder %s30, 0
  %p32 = pneg %p31
  %34 = shalt.err (%p32)
  %s35 = scalar_lea.sflag [#allocation2], 2
  %36 = vsyncmov %s35
  %s37 = vpop.sfrf %36
  %p38 = scmp.eq.s32.totalorder %s37, 0
  %p39 = pneg %p38
  %41 = shalt.err (%p39)
  %s42 = scalar_lea.sflag [#allocation2], 3
  %43 = vsyncmov %s42
  %s44 = vpop.sfrf %43
  %p45 = scmp.eq.s32.totalorder %s44, 0
  %p46 = pneg %p45
  %48 = shalt.err (%p46)

</llo_original>
